<compile_context>
chip_gen: v6e
topology: v6e:2x2x1
jax: 0.10.0
libtpu: 0.0.40
codegen_flags: <defaults>
</compile_context>

<pallas_src>
import functools

import jax
import jax.numpy as jnp
import numpy as np
from jax import lax
from jax.experimental import pallas as pl
from jax.experimental.pallas import tpu as pltpu


def _emb_kernel(
    # blocked VMEM inputs, one (T, ...) tile per grid step
    tok_ref,        # (T, H)  pre-gathered, renormed token rows
    seg_ids_ref,    # (T, 1)  int32 segment ids
    age_ref,        # (T, 1)  float32
    pos_ref,        # (T, 1)  float32
    keep_ref,       # (T, 1)  float32, 0 for seq positions < 5 else 1
    # constant VMEM tiles (same block every step)
    t2v_ref,        # (8, H)  rows: w_age, b_age, w_abs, b_abs, 0, 0, 0, 0
    seg_tab_ref,    # (8, H)  renormed segment table (rows 4..7 are zero pad)
    # SMEM scalars
    alphas_ref,     # (3,)    ReZero alphas: age, abs, seg
    # output
    out_ref,        # (T, H)
    *, hidden,
):
    tok = tok_ref[...]                                   # (T, H)
    age = age_ref[...]                                   # (T, 1)
    posn = pos_ref[...]                                  # (T, 1)
    keep = keep_ref[...]                                 # (T, 1)

    w_age = t2v_ref[0:1, :]                              # (1, H)
    b_age = t2v_ref[1:2, :]
    w_abs = t2v_ref[2:3, :]
    b_abs = t2v_ref[3:4, :]

    # Time2Vec: first H-1 columns get f(.) applied, last column stays linear.
    col = lax.broadcasted_iota(jnp.int32, (1, hidden), 1)
    periodic = col < (hidden - 1)                        # (1, H), computed once per block

    lin_a = age * w_age + b_age                          # (T, H)
    pe_age = jnp.where(periodic, jnp.cos(lin_a), lin_a) * keep

    lin_p = posn * w_abs + b_abs                         # (T, H)
    pe_abs = jnp.where(periodic, jnp.sin(lin_p), lin_p) * keep

    # Segment embedding: 4-row table is VMEM-resident; masked select per row.
    seg_ids = seg_ids_ref[...]                           # (T, 1) int32
    seg = jnp.zeros_like(tok)
    for r in range(4):                                   # unrolled at trace time
        row = seg_tab_ref[r:r + 1, :]                    # (1, H)
        seg = seg + jnp.where(seg_ids == r, row, 0.0)

    a_age = alphas_ref[0]
    a_abs = alphas_ref[1]
    a_seg = alphas_ref[2]

    out_ref[...] = tok + a_age * pe_age + a_abs * pe_abs + a_seg * seg


def _renorm_table(tbl):
    """nn.Embedding(max_norm=1, norm_type=2): clip each row's L2 norm to <= 1."""
    n = jnp.sqrt(jnp.sum(tbl * tbl, axis=-1, keepdims=True))
    return tbl * jnp.where(n > 1.0, 1.0 / (n + 1e-7), 1.0)


def test_embeddings_forward(tokens, position, age, segment, params, *, interpret=False):
    """tokens/position/age/segment: [B, S]. Returns ([B, S, H], None)."""
    B, S = tokens.shape
    BS = B * S
    token_table = params["token_table"]       # [V, H]
    seg_table = params["segment_table"]       # [4, H]
    H = token_table.shape[1]

    # --- wrapper glue: renorm hoisted out of the per-token path, pre-gather ---
    tok_tbl_n = _renorm_table(token_table.astype(jnp.float32))
    seg_tbl_n = _renorm_table(seg_table.astype(jnp.float32))

    tok_ids = tokens.reshape(BS).astype(jnp.int32)
    seg_ids = segment.reshape(BS, 1).astype(jnp.int32)

    tok_rows = jnp.take(tok_tbl_n, tok_ids, axis=0)       # [BS, H] single XLA gather

    age_f = age.reshape(BS, 1).astype(jnp.float32)
    pos_f = position.reshape(BS, 1).astype(jnp.float32)
    # pos[:, :5] *= 0  -> zero positional encodings for the first 5 seq slots
    keep = (jnp.tile(jnp.arange(S), (B,)) >= 5).astype(jnp.float32).reshape(BS, 1)

    # Fused Time2Vec params: one sublane-aligned (8, H) tile
    w_age = jnp.concatenate([params["age_w"], params["age_w0"]], axis=-1)   # (1, H)
    b_age = jnp.concatenate([params["age_b"], params["age_b0"]], axis=-1)
    w_abs = jnp.concatenate([params["abs_w"], params["abs_w0"]], axis=-1)
    b_abs = jnp.concatenate([params["abs_b"], params["abs_b0"]], axis=-1)
    t2v_params = jnp.concatenate(
        [w_age, b_age, w_abs, b_abs, jnp.zeros((4, H), jnp.float32)], axis=0)  # (8, H)

    # Segment table padded to 8 sublanes (rows 4..7 are zero, never selected)
    seg_tbl_pad = jnp.concatenate([seg_tbl_n, jnp.zeros((4, H), jnp.float32)], axis=0)

    alphas = jnp.stack(
        [params["alpha_age"], params["alpha_abs"], params["alpha_seg"]]
    ).astype(jnp.float32)

    # --- row blocking: T rows per grid step, lane-dense (T, H) output tiles ---
    T = 256
    if BS < T:
        T = max(8, ((BS + 7) // 8) * 8)
    BS_pad = ((BS + T - 1) // T) * T
    pad = BS_pad - BS
    if pad:
        tok_rows = jnp.pad(tok_rows, ((0, pad), (0, 0)))
        seg_ids = jnp.pad(seg_ids, ((0, pad), (0, 0)))
        age_f = jnp.pad(age_f, ((0, pad), (0, 0)))
        pos_f = jnp.pad(pos_f, ((0, pad), (0, 0)))
        keep = jnp.pad(keep, ((0, pad), (0, 0)))

    kernel = functools.partial(_emb_kernel, hidden=H)

    grid_spec = pltpu.PrefetchScalarGridSpec(
        num_scalar_prefetch=0,
        grid=(BS_pad // T,),
        in_specs=[
            pl.BlockSpec((T, H), lambda i: (i, 0)),     # token rows
            pl.BlockSpec((T, 1), lambda i: (i, 0)),     # segment ids
            pl.BlockSpec((T, 1), lambda i: (i, 0)),     # age
            pl.BlockSpec((T, 1), lambda i: (i, 0)),     # position
            pl.BlockSpec((T, 1), lambda i: (i, 0)),     # keep mask
            pl.BlockSpec((8, H), lambda i: (0, 0)),     # fused Time2Vec params
            pl.BlockSpec((8, H), lambda i: (0, 0)),     # segment table (resident)
            pl.BlockSpec(memory_space=pltpu.SMEM),      # ReZero alphas
        ],
        out_specs=pl.BlockSpec((T, H), lambda i: (i, 0)),
    )

    out_flat = pl.pallas_call(
        kernel,
        out_shape=jax.ShapeDtypeStruct((BS_pad, H), jnp.float32),
        grid_spec=grid_spec,
        compiler_params=pltpu.CompilerParams(
            dimension_semantics=("parallel",)),
        interpret=interpret,
    )(tok_rows, seg_ids, age_f, pos_f, keep, t2v_params, seg_tbl_pad, alphas)

    return out_flat[:BS].reshape(B, S, H), None


def reference_forward(tokens, position, age, segment, params):
    """Pure-JAX reference for validation."""
    tok = _renorm_table(params["token_table"])[tokens]            # [B,S,H]
    seg = _renorm_table(params["segment_table"])[segment]         # [B,S,H]

    def t2v(tau, f, w, b, w0, b0):
        v1 = f(tau[..., None] * w[0] + b[0])                      # [B,S,H-1]
        v2 = tau[..., None] * w0[0] + b0[0]                       # [B,S,1]
        return jnp.concatenate([v1, v2], axis=-1)

    S = tokens.shape[1]
    keep = (jnp.arange(S) >= 5).astype(jnp.float32)[None, :, None]

    pe_age = t2v(age.astype(jnp.float32), jnp.cos,
                 params["age_w"], params["age_b"],
                 params["age_w0"], params["age_b0"]) * keep
    pe_abs = t2v(position.astype(jnp.float32), jnp.sin,
                 params["abs_w"], params["abs_b"],
                 params["abs_w0"], params["abs_b0"]) * keep

    out = tok + params["alpha_age"] * pe_age
    out = out + params["alpha_abs"] * pe_abs
    out = out + params["alpha_seg"] * seg
    return out


def init_params(key, vocab_size, hidden):
    d = 0.01
    ks = jax.random.split(key, 10)
    u = lambda k, shape: jax.random.uniform(k, shape, jnp.float32, -d, d)
    return {
        "token_table": u(ks[0], (vocab_size, hidden)),
        "segment_table": u(ks[1], (4, hidden)),
        # PositionalEmbedding(1, hidden): w/b are (1, hidden-1), w0/b0 are (1, 1)
        "age_w": u(ks[2], (1, hidden - 1)),
        "age_b": u(ks[3], (1, hidden - 1)),
        "age_w0": u(ks[4], (1, 1)),
        "age_b0": u(ks[5], (1, 1)),
        "abs_w": u(ks[6], (1, hidden - 1)),
        "abs_b": u(ks[7], (1, hidden - 1)),
        "abs_w0": u(ks[8], (1, 1)),
        "abs_b0": u(ks[9], (1, 1)),
        # ReZero(simple=True, fill=0): scalar alphas initialized to 0
        "alpha_age": jnp.float32(0.0),
        "alpha_abs": jnp.float32(0.0),
        "alpha_seg": jnp.float32(0.0),
    }


if __name__ == "__main__":
    B, S, H, V = 2, 8, 128, 32
    key = jax.random.PRNGKey(0)
    kp, kt, ks, ka, kx = jax.random.split(key, 5)

    params = init_params(kp, V, H)
    # Module initializes ReZero alphas to 0; override with nonzero values here so the
    # Time2Vec / segment paths are actually exercised by the correctness check.
    params["alpha_age"] = jnp.float32(0.3)
    params["alpha_abs"] = jnp.float32(0.2)
    params["alpha_seg"] = jnp.float32(0.5)

    tokens = jax.random.randint(kt, (B, S), 0, V, dtype=jnp.int32)
    segment = jax.random.randint(ks, (B, S), 0, 4, dtype=jnp.int32)
    age = jax.random.uniform(ka, (B, S), jnp.float32, 0.0, 80.0)
    position = jax.random.uniform(kx, (B, S), jnp.float32, 0.0, 1000.0)

    out, _ = test_embeddings_forward(tokens, position, age, segment, params)
    out = jax.block_until_ready(out)

    ref = reference_forward(tokens, position, age, segment, params)
    np.testing.assert_allclose(np.asarray(out), np.asarray(ref), rtol=1e-5, atol=1e-5)

    print("KERNEL_OK")
</pallas_src>

<mosaic_0001>
module attributes {stable_mosaic.version = 11 : i64} {
  func.func @_emb_kernel(%arg0: i32, %arg1: memref<16x128xf32, #tpu.memory_space<vmem>>, %arg2: memref<16x1xi32, #tpu.memory_space<vmem>>, %arg3: memref<16x1xf32, #tpu.memory_space<vmem>>, %arg4: memref<16x1xf32, #tpu.memory_space<vmem>>, %arg5: memref<16x1xf32, #tpu.memory_space<vmem>>, %arg6: memref<8x128xf32, #tpu.memory_space<vmem>>, %arg7: memref<8x128xf32, #tpu.memory_space<vmem>>, %arg8: memref<3xf32, #tpu.memory_space<smem>>, %arg9: memref<16x128xf32, #tpu.memory_space<vmem>>) attributes {dimension_semantics = [#tpu.dimension_semantics<parallel>], iteration_bounds = array<i64: 1>, scalar_prefetch = 0 : i64, scratch_operands = 0 : i64, tpu.core_type = #tpu.core_type<tc>, window_params = [{transform_indices = @transform_0, window_bounds = array<i64: 16, 128>}, {transform_indices = @transform_1, window_bounds = array<i64: 16, 1>}, {transform_indices = @transform_2, window_bounds = array<i64: 16, 1>}, {transform_indices = @transform_3, window_bounds = array<i64: 16, 1>}, {transform_indices = @transform_4, window_bounds = array<i64: 16, 1>}, {pipeline_mode = #tpu.pipeline_mode<synchronous>, transform_indices = @transform_5, window_bounds = array<i64: 8, 128>}, {pipeline_mode = #tpu.pipeline_mode<synchronous>, transform_indices = @transform_6, window_bounds = array<i64: 8, 128>}, {transform_indices = @transform_7, window_bounds = array<i64: 3>}, {transform_indices = @transform_8, window_bounds = array<i64: 16, 128>}]} {
    %c0 = arith.constant 0 : index
    %c0_0 = arith.constant 0 : index
    %0 = vector.load %arg1[%c0, %c0_0] : memref<16x128xf32, #tpu.memory_space<vmem>>, vector<16x128xf32>
    %c0_1 = arith.constant 0 : index
    %c0_2 = arith.constant 0 : index
    %1 = vector.load %arg3[%c0_1, %c0_2] : memref<16x1xf32, #tpu.memory_space<vmem>>, vector<16x1xf32>
    %c0_3 = arith.constant 0 : index
    %c0_4 = arith.constant 0 : index
    %2 = vector.load %arg4[%c0_3, %c0_4] : memref<16x1xf32, #tpu.memory_space<vmem>>, vector<16x1xf32>
    %c0_5 = arith.constant 0 : index
    %c0_6 = arith.constant 0 : index
    %3 = vector.load %arg5[%c0_5, %c0_6] : memref<16x1xf32, #tpu.memory_space<vmem>>, vector<16x1xf32>
    %c0_7 = arith.constant 0 : index
    %c0_8 = arith.constant 0 : index
    %4 = vector.load %arg6[%c0_7, %c0_8] : memref<8x128xf32, #tpu.memory_space<vmem>>, vector<1x128xf32>
    %c1 = arith.constant 1 : index
    %c0_9 = arith.constant 0 : index
    %5 = vector.load %arg6[%c1, %c0_9] : memref<8x128xf32, #tpu.memory_space<vmem>>, vector<1x128xf32>
    %c2 = arith.constant 2 : index
    %c0_10 = arith.constant 0 : index
    %6 = vector.load %arg6[%c2, %c0_10] : memref<8x128xf32, #tpu.memory_space<vmem>>, vector<1x128xf32>
    %c3 = arith.constant 3 : index
    %c0_11 = arith.constant 0 : index
    %7 = vector.load %arg6[%c3, %c0_11] : memref<8x128xf32, #tpu.memory_space<vmem>>, vector<1x128xf32>
    %8 = tpu.iota {dimensions = array<i32: 1>} : vector<1x128xi32>
    %c127_i32 = arith.constant 127 : i32
    %9 = vector.broadcast %c127_i32 : i32 to vector<1x128xi32>
    %10 = arith.cmpi slt, %8, %9 : vector<1x128xi32>
    %11 = vector.broadcast %1 : vector<16x1xf32> to vector<16x128xf32>
    %12 = vector.broadcast %4 : vector<1x128xf32> to vector<16x128xf32>
    %13 = arith.mulf %11, %12 : vector<16x128xf32>
    %14 = vector.broadcast %5 : vector<1x128xf32> to vector<16x128xf32>
    %15 = arith.addf %13, %14 : vector<16x128xf32>
    %16 = math.cos %15 : vector<16x128xf32>
    %17 = vector.shape_cast %10 : vector<1x128xi1> to vector<1x128xi1>
    %18 = vector.broadcast %17 : vector<1x128xi1> to vector<16x128xi1>
    %19 = arith.select %18, %16, %15 : vector<16x128xi1>, vector<16x128xf32>
    %20 = vector.broadcast %3 : vector<16x1xf32> to vector<16x128xf32>
    %21 = arith.mulf %19, %20 : vector<16x128xf32>
    %22 = vector.broadcast %2 : vector<16x1xf32> to vector<16x128xf32>
    %23 = vector.broadcast %6 : vector<1x128xf32> to vector<16x128xf32>
    %24 = arith.mulf %22, %23 : vector<16x128xf32>
    %25 = vector.broadcast %7 : vector<1x128xf32> to vector<16x128xf32>
    %26 = arith.addf %24, %25 : vector<16x128xf32>
    %27 = math.sin %26 : vector<16x128xf32>
    %28 = vector.shape_cast %10 : vector<1x128xi1> to vector<1x128xi1>
    %29 = vector.broadcast %28 : vector<1x128xi1> to vector<16x128xi1>
    %30 = arith.select %29, %27, %26 : vector<16x128xi1>, vector<16x128xf32>
    %31 = vector.broadcast %3 : vector<16x1xf32> to vector<16x128xf32>
    %32 = arith.mulf %30, %31 : vector<16x128xf32>
    %c0_12 = arith.constant 0 : index
    %c0_13 = arith.constant 0 : index
    %33 = vector.load %arg2[%c0_12, %c0_13] : memref<16x1xi32, #tpu.memory_space<vmem>>, vector<16x1xi32>
    %cst = arith.constant 0.000000e+00 : f32
    %34 = vector.broadcast %cst : f32 to vector<16x128xf32>
    %c0_14 = arith.constant 0 : index
    %c0_15 = arith.constant 0 : index
    %35 = vector.load %arg7[%c0_14, %c0_15] : memref<8x128xf32, #tpu.memory_space<vmem>>, vector<1x128xf32>
    %c0_i32 = arith.constant 0 : i32
    %36 = vector.broadcast %c0_i32 : i32 to vector<16x1xi32>
    %37 = arith.cmpi eq, %33, %36 : vector<16x1xi32>
    %cst_16 = arith.constant 0.000000e+00 : f32
    %38 = vector.shape_cast %37 : vector<16x1xi1> to vector<16x1xi1>
    %39 = vector.broadcast %38 : vector<16x1xi1> to vector<16x128xi1>
    %40 = vector.shape_cast %35 : vector<1x128xf32> to vector<1x128xf32>
    %41 = vector.broadcast %40 : vector<1x128xf32> to vector<16x128xf32>
    %42 = vector.broadcast %cst_16 : f32 to vector<16x128xf32>
    %43 = arith.select %39, %41, %42 : vector<16x128xi1>, vector<16x128xf32>
    %44 = arith.addf %34, %43 : vector<16x128xf32>
    %c1_17 = arith.constant 1 : index
    %c0_18 = arith.constant 0 : index
    %45 = vector.load %arg7[%c1_17, %c0_18] : memref<8x128xf32, #tpu.memory_space<vmem>>, vector<1x128xf32>
    %c1_i32 = arith.constant 1 : i32
    %46 = vector.broadcast %c1_i32 : i32 to vector<16x1xi32>
    %47 = arith.cmpi eq, %33, %46 : vector<16x1xi32>
    %cst_19 = arith.constant 0.000000e+00 : f32
    %48 = vector.shape_cast %47 : vector<16x1xi1> to vector<16x1xi1>
    %49 = vector.broadcast %48 : vector<16x1xi1> to vector<16x128xi1>
    %50 = vector.shape_cast %45 : vector<1x128xf32> to vector<1x128xf32>
    %51 = vector.broadcast %50 : vector<1x128xf32> to vector<16x128xf32>
    %52 = vector.broadcast %cst_19 : f32 to vector<16x128xf32>
    %53 = arith.select %49, %51, %52 : vector<16x128xi1>, vector<16x128xf32>
    %54 = arith.addf %44, %53 : vector<16x128xf32>
    %c2_20 = arith.constant 2 : index
    %c0_21 = arith.constant 0 : index
    %55 = vector.load %arg7[%c2_20, %c0_21] : memref<8x128xf32, #tpu.memory_space<vmem>>, vector<1x128xf32>
    %c2_i32 = arith.constant 2 : i32
    %56 = vector.broadcast %c2_i32 : i32 to vector<16x1xi32>
    %57 = arith.cmpi eq, %33, %56 : vector<16x1xi32>
    %cst_22 = arith.constant 0.000000e+00 : f32
    %58 = vector.shape_cast %57 : vector<16x1xi1> to vector<16x1xi1>
    %59 = vector.broadcast %58 : vector<16x1xi1> to vector<16x128xi1>
    %60 = vector.shape_cast %55 : vector<1x128xf32> to vector<1x128xf32>
    %61 = vector.broadcast %60 : vector<1x128xf32> to vector<16x128xf32>
    %62 = vector.broadcast %cst_22 : f32 to vector<16x128xf32>
    %63 = arith.select %59, %61, %62 : vector<16x128xi1>, vector<16x128xf32>
    %64 = arith.addf %54, %63 : vector<16x128xf32>
    %c3_23 = arith.constant 3 : index
    %c0_24 = arith.constant 0 : index
    %65 = vector.load %arg7[%c3_23, %c0_24] : memref<8x128xf32, #tpu.memory_space<vmem>>, vector<1x128xf32>
    %c3_i32 = arith.constant 3 : i32
    %66 = vector.broadcast %c3_i32 : i32 to vector<16x1xi32>
    %67 = arith.cmpi eq, %33, %66 : vector<16x1xi32>
    %cst_25 = arith.constant 0.000000e+00 : f32
    %68 = vector.shape_cast %67 : vector<16x1xi1> to vector<16x1xi1>
    %69 = vector.broadcast %68 : vector<16x1xi1> to vector<16x128xi1>
    %70 = vector.shape_cast %65 : vector<1x128xf32> to vector<1x128xf32>
    %71 = vector.broadcast %70 : vector<1x128xf32> to vector<16x128xf32>
    %72 = vector.broadcast %cst_25 : f32 to vector<16x128xf32>
    %73 = arith.select %69, %71, %72 : vector<16x128xi1>, vector<16x128xf32>
    %74 = arith.addf %64, %73 : vector<16x128xf32>
    %c0_26 = arith.constant 0 : index
    %75 = memref.load %arg8[%c0_26] : memref<3xf32, #tpu.memory_space<smem>>
    %c1_27 = arith.constant 1 : index
    %76 = memref.load %arg8[%c1_27] : memref<3xf32, #tpu.memory_space<smem>>
    %c2_28 = arith.constant 2 : index
    %77 = memref.load %arg8[%c2_28] : memref<3xf32, #tpu.memory_space<smem>>
    %78 = vector.broadcast %75 : f32 to vector<16x128xf32>
    %79 = arith.mulf %78, %21 : vector<16x128xf32>
    %80 = arith.addf %0, %79 : vector<16x128xf32>
    %81 = vector.broadcast %76 : f32 to vector<16x128xf32>
    %82 = arith.mulf %81, %32 : vector<16x128xf32>
    %83 = arith.addf %80, %82 : vector<16x128xf32>
    %84 = vector.broadcast %77 : f32 to vector<16x128xf32>
    %85 = arith.mulf %84, %74 : vector<16x128xf32>
    %86 = arith.addf %83, %85 : vector<16x128xf32>
    %c0_29 = arith.constant 0 : index
    %c0_30 = arith.constant 0 : index
    %87 = vector.load %arg9[%c0_29, %c0_30] : memref<16x128xf32, #tpu.memory_space<vmem>>, vector<16x128xf32>
    tpu.vector_store %arg9[%c0_29, %c0_30], %86 {strides = array<i32>} : memref<16x128xf32, #tpu.memory_space<vmem>>, vector<16x128xf32>,
    return
  }
  func.func @transform_0(%arg0: i32) -> (i32, i32) {
    %c0_i32 = arith.constant 0 : i32
    %c0_i32_0 = arith.constant 0 : i32
    return %arg0, %c0_i32 : i32, i32
  }
  func.func @transform_1(%arg0: i32) -> (i32, i32) {
    %c0_i32 = arith.constant 0 : i32
    %c0_i32_0 = arith.constant 0 : i32
    return %arg0, %c0_i32 : i32, i32
  }
  func.func @transform_2(%arg0: i32) -> (i32, i32) {
    %c0_i32 = arith.constant 0 : i32
    %c0_i32_0 = arith.constant 0 : i32
    return %arg0, %c0_i32 : i32, i32
  }
  func.func @transform_3(%arg0: i32) -> (i32, i32) {
    %c0_i32 = arith.constant 0 : i32
    %c0_i32_0 = arith.constant 0 : i32
    return %arg0, %c0_i32 : i32, i32
  }
  func.func @transform_4(%arg0: i32) -> (i32, i32) {
    %c0_i32 = arith.constant 0 : i32
    %c0_i32_0 = arith.constant 0 : i32
    return %arg0, %c0_i32 : i32, i32
  }
  func.func @transform_5(%arg0: i32) -> (i32, i32) {
    %c0_i32 = arith.constant 0 : i32
    %c0_i32_0 = arith.constant 0 : i32
    %c0_i32_1 = arith.constant 0 : i32
    return %c0_i32, %c0_i32_0 : i32, i32
  }
  func.func @transform_6(%arg0: i32) -> (i32, i32) {
    %c0_i32 = arith.constant 0 : i32
    %c0_i32_0 = arith.constant 0 : i32
    %c0_i32_1 = arith.constant 0 : i32
    return %c0_i32, %c0_i32_0 : i32, i32
  }
  func.func @transform_7(%arg0: i32) -> i32 {
    %c0_i32 = arith.constant 0 : i32
    %c0_i32_0 = arith.constant 0 : i32
    return %c0_i32 : i32
  }
  func.func @transform_8(%arg0: i32) -> (i32, i32) {
    %c0_i32 = arith.constant 0 : i32
    %c0_i32_0 = arith.constant 0 : i32
    return %arg0, %c0_i32 : i32, i32
  }
}

</mosaic_0001>

<llo_original>
// kernel: tpu_custom_call.1
$region0: #{tpu_custom_call.1}
  #allocation0 [shape = 'u32[]', space=smem, size = 0x4, offset = 0x4, fixed_abs, tag = 'smem constant byte address 0x4 - core index']
  #allocation1 [shape = 'u32[144,128]{1,0:T(1,128)}', space=vmem, size = 0x12000, scoped, tag = 'internal scratch']
  %s0 = inlined_call_operand.vmem [shape: f32[16,128], index: 0, kind: input, shape index: {}]
  %s1 = inlined_call_operand.vmem [shape: s32[16,1], index: 1, kind: input, shape index: {}]
  %s2 = inlined_call_operand.vmem [shape: f32[16,1], index: 2, kind: input, shape index: {}]
  %s3 = inlined_call_operand.vmem [shape: f32[16,1], index: 3, kind: input, shape index: {}]
  %s4 = inlined_call_operand.vmem [shape: f32[16,1], index: 4, kind: input, shape index: {}]
  %s5 = inlined_call_operand.vmem [shape: f32[8,128], index: 5, kind: input, shape index: {}]
  %s6 = inlined_call_operand.vmem [shape: f32[8,128], index: 6, kind: input, shape index: {}]
  %s7 = inlined_call_operand.vmem [shape: f32[3], index: 7, kind: input, shape index: {}]
  %s8 = inlined_call_operand.hbm [shape: f32[16,128], index: 8, kind: output, shape index: {}]
  %s9 = sld [smem:[#allocation0]]
  $region46: #{tpu_custom_call.1} parent=0
    _
  %s11 = ssub.s32 1, %s9
  %s12 = scalar_select 0, %s11, %s9
  $region1: #{tpu_custom_call.1} parent=0
    #allocation2 [shape = 'u8[512]{0}', space=smem, size = 0x200, scoped, tag = 'input window, operand 7, single buffered']
    #allocation3 [shape = 's32[1]{0}', space=sflag, size = 0x4, scoped, tag = 'scoped memory for tpu_custom_call.1']
    #allocation4 [shape = 's32[1]{0}', space=sflag, size = 0x4, scoped, tag = 'scoped memory for tpu_custom_call.1']
    #allocation5 [shape = 'u8[8192]{0}', space=vmem, size = 0x2000, scoped, tag = 'output window, operand 0, single buffered']
    %13 = vsyncpa [#allocation4], 0
    %14 = vsyncpa [#allocation3], 0
    // Predicated region
    $region2: #{tpu_custom_call.1} parent=1 // pred_check
      _
    $region3: #{tpu_custom_call.1} parent=1 // pred_check_branch
      %16 = sbr.rel (0) target = $region5
    $region4: #{tpu_custom_call.1} parent=1 // pred_region
      _
    $region5: #{tpu_custom_call.1} parent=1 // pred_fallthru
      _
    // Predicated region
    $region6: #{tpu_custom_call.1} parent=1 // pred_check
      _
    $region7: #{tpu_custom_call.1} parent=1 // pred_check_branch
      %18 = sbr.rel (0) target = $region9
    $region8: #{tpu_custom_call.1} parent=1 // pred_region
      _
    $region9: #{tpu_custom_call.1} parent=1 // pred_fallthru
      _
    // Predicated region
    $region10: #{tpu_custom_call.1} parent=1 // pred_check
      _
    $region11: #{tpu_custom_call.1} parent=1 // pred_check_branch
      %20 = sbr.rel (0) target = $region13
    $region12: #{tpu_custom_call.1} parent=1 // pred_region
      _
    $region13: #{tpu_custom_call.1} parent=1 // pred_fallthru
      _
    // Predicated region
    $region14: #{tpu_custom_call.1} parent=1 // pred_check
      _
    $region15: #{tpu_custom_call.1} parent=1 // pred_check_branch
      %22 = sbr.rel (0) target = $region17
    $region16: #{tpu_custom_call.1} parent=1 // pred_region
      _
    $region17: #{tpu_custom_call.1} parent=1 // pred_fallthru
      _
    // Predicated region
    $region18: #{tpu_custom_call.1} parent=1 // pred_check
      _
    $region19: #{tpu_custom_call.1} parent=1 // pred_check_branch
      %24 = sbr.rel (0) target = $region21
    $region20: #{tpu_custom_call.1} parent=1 // pred_region
      _
    $region21: #{tpu_custom_call.1} parent=1 // pred_fallthru
      _
    // Predicated region
    $region22: #{tpu_custom_call.1} parent=1 // pred_check
      _
    $region23: #{tpu_custom_call.1} parent=1 // pred_check_branch
      %26 = sbr.rel (0) target = $region25
    $region24: #{tpu_custom_call.1} parent=1 // pred_region
      _
    $region25: #{tpu_custom_call.1} parent=1 // pred_fallthru
      _
    // Predicated region
    $region26: #{tpu_custom_call.1} parent=1 // pred_check
      _
    $region27: #{tpu_custom_call.1} parent=1 // pred_check_branch
      %28 = sbr.rel (0) target = $region29
    $region28: #{tpu_custom_call.1} parent=1 // pred_region
      _
    $region29: #{tpu_custom_call.1} parent=1 // pred_fallthru
      _
    // Predicated region
    $region30: #{tpu_custom_call.1} parent=1 // pred_check
      _
    $region31: #{tpu_custom_call.1} parent=1 // pred_check_branch
      %30 = sbr.rel (0) target = $region33
    $region32: #{tpu_custom_call.1} parent=1 // pred_region
      %s32 = ssub.s32 16, 16
      %33 = vsyncadd [#allocation4], %s32
      %s35 = sshll.u32 %s7, 4
      %s36 = int_to_ptr.vmem [resolvable:$true] %s35
      %38 = dma.vmem_to_smem %s36, 16, [#allocation2], [#allocation4]
    $region33: #{tpu_custom_call.1} parent=1 // pred_fallthru
      _
    // Predicated region
    $region34: #{tpu_custom_call.1} parent=1 // pred_check
      _
    $region35: #{tpu_custom_call.1} parent=1 // pred_check_branch
      %40 = sbr.rel (0) target = $region37
    $region36: #{tpu_custom_call.1} parent=1 // pred_region
      %41 = dma.done [#allocation4], 16
    $region37: #{tpu_custom_call.1} parent=1 // pred_fallthru
      _
    %42 = sfence
    %v43 = vld [vmem:[%s0] sm:$0xff]
    %v44 = vld [vmem:[%s0 + $0x8] sm:$0xff]
    %v45 = vld [vmem:[%s2] sm:$0xff]
    %v46 = vld [vmem:[%s2 + $0x8] sm:$0xff]
    %v47 = vld [vmem:[%s3] sm:$0xff]
    %v48 = vld [vmem:[%s3 + $0x8] sm:$0xff]
    %v49 = vld [vmem:[%s4] sm:$0xff]
    %v50 = vld [vmem:[%s4 + $0x8] sm:$0xff]
    %v51 = vld [vmem:[%s5] sm:$0x1]
    %v52 = vld [vmem:[%s5 + $0x1] sm:$0x1]
    %v53 = vld [vmem:[%s5 + $0x2] sm:$0x1]
    %v54 = vld [vmem:[%s5 + $0x3] sm:$0x1]
    %v55 = vlaneseq
    %v56 = vand.u32 %v55, 127
    %vm57 = vcmp.lt.s32.totalorder %v56, 127
    %59 = vset.pattern.permute.xlu0 0
    %60 = vperm.xlu0 %59, %v45
    %v61 = vpop.permute.xlu0 %60
    %64 = vset.pattern.permute.xlu0 0
    %65 = vperm.xlu0 %64, %v46
    %v66 = vpop.permute.xlu0 %65
    %v68 = vlaneseq
    %v69 = vshrl.u32 %v68, 7
    %v70 = vsub.s32 0, %v69
    %v71 = vrot.slane %v51, %v70
    %v72 = vmul.f32 %v61, %v71
    %v73 = vmul.f32 %v66, %v71
    %v74 = vlaneseq
    %v75 = vshrl.u32 %v74, 7
    %v76 = vsub.s32 0, %v75
    %v77 = vrot.slane %v52, %v76
    %v78 = vadd.f32 %v72, %v77
    %v79 = vadd.f32 %v73, %v77
    %v80 = vand.u32 2147483647, %v78
    %vm81 = vcmp.le.f32.partialorder %v80, 0.7853982
    %vm82 = vcmp.lt.s32.totalorder %v78, 0
    %v83 = vand.u32 %v78, 2139095040
    %v84 = vshrl.u32 %v83, 23
    %v85 = vsub.s32 %v84, 127
    %v86 = vand.u32 2147483647, %v78
    %v87 = vand.u32 %v86, 8388607
    %v88 = vor.u32 %v87, 8388608
    %v89 = vsub.s32 0, %v88
    %v90 = vadd.s32 %v85, 1
    %vm91 = vcmp.gt.s32.totalorder %v90, 0
    %v92 = vsel %vm91, %v90, 0
    %v93 = vshrl.u32 %v92, 5
    %v94 = vand.u32 %v92, 31
    %v95 = vsub.s32 32, %v94
    %v96 = vshrl.u32 683565275, %v95
    %v97 = vshll.u32 683565275, %v94
    %v98 = vshrl.u32 2475754826, %v95
    %v99 = vor.u32 %v97, %v98
    %v100 = vshll.u32 2475754826, %v94
    %v101 = vshrl.u32 2131351028, %v95
    %v102 = vor.u32 %v100, %v101
    %v103 = vshll.u32 2131351028, %v94
    %v104 = vshrl.u32 2102212464, %v95
    %v105 = vor.u32 %v103, %v104
    %v106 = vshll.u32 2102212464, %v94
    %v107 = vshrl.u32 920167782, %v95
    %v108 = vor.u32 %v106, %v107
    %v109 = vshll.u32 920167782, %v94
    %v110 = vshrl.u32 1326507024, %v95
    %v111 = vor.u32 %v109, %v110
    %vm112 = vcmp.lt.s32.totalorder %v93, 1
    %vm113 = vcmp.lt.s32.totalorder %v93, 2
    %vm114 = vcmp.lt.s32.totalorder %v93, 3
    %vm115 = vcmp.lt.s32.totalorder %v93, 4
    %v116 = vsel %vm112, %v96, %v99
    %v117 = vsel %vm115, %v105, 2102212464
    %v118 = vsel %vm114, %v102, %v117
    %v119 = vsel %vm113, %v116, %v118
    %v120 = vsel %vm112, %v99, %v102
    %v121 = vsel %vm115, %v108, 920167782
    %v122 = vsel %vm114, %v105, %v121
    %v123 = vsel %vm113, %v120, %v122
    %v124 = vsel %vm112, %v102, %v105
    %v125 = vsel %vm115, %v111, 1326507024
    %v126 = vsel %vm114, %v108, %v125
    %v127 = vsel %vm113, %v124, %v126
    %v128 = vshll.u32 %v88, 8
    %v129 = vmul.u32.u64.compose %v128, %v127
    %v130 = vextract.low.u32 %v129
    %v131 = vextract.high.u32 %v129
    %v132 = vmul.u32.u64.compose %v128, %v123
    %v133 = vextract.low.u32 %v132
    %v134 = vextract.high.u32 %v132
    %v135 = vmul.u32 %v128, %v119
    %v136 = vadd.s32 %v131, %v133
    %vm137 = vc.u32 %v131, %v133
    %v138 = vadd.s32 %v134, 1
    %v139 = vsel %vm137, %v138, %v134
    %v140 = vadd.s32 %v135, %v139
    %v141 = vadd.s32 %v140, 536870912
    %v142 = vshrl.u32 %v141, 30
    %v143 = vshll.u32 %v142, 30
    %v144 = vsub.s32 %v140, %v143
    %vm145 = vcmp.lt.s32.totalorder %v144, 0
    %v146 = vsub.s32 0, %v144
    %v147 = vsel %vm145, %v146, %v144
    %v148 = vclz %v147
    %v149 = vsub.s32 %v148, 2
    %vm150 = vcmp.gt.s32.totalorder 0, %v149
    %v151 = vsel %vm150, 0, %v149
    %v152 = vsub.s32 32, %v151
    %v153 = vshll.u32 %v144, %v151
    %v154 = vshrl.u32 %v136, %v152
    %v155 = vor.u32 %v153, %v154
    %v156 = vsub.s32 4294967266, %v151
    %v157 = vadd.s32 %v156, 127
    %v158 = vshll.u32 %v157, 23
    %v159 = vor.u32 4788187, %v158
    %v160 = vand.u32 2147483647, %v159
    %v162 = vcvt.s32.f32 %v155
    %v163 = vmul.f32 %v162, %v160
    %v164 = vxor.u32 %v163, 2147483648
    %v165 = vsel %vm82, %v164, %v163
    %v166 = vsub.s32 4, %v142
    %v167 = vsel %vm82, %v166, %v142
    %v168 = vsel %vm81, %v78, %v165
    %v169 = vsel %vm81, 0, %v167
    %v170 = vcosq.f32.pop %v168
    %v171 = vsinq.f32.pop %v168
    %vm172 = vweird.f32 %v78
    %v173 = vand.u32 %v169, 3
    %vm174 = vcmp.lt.s32.totalorder %v173, 2
    %vm175 = vcmp.eq.s32.totalorder %v173, 0
    %v176 = vxor.u32 %v171, 2147483648
    %v177 = vsel %vm175, %v170, %v176
    %vm178 = vcmp.eq.s32.totalorder %v173, 2
    %v179 = vxor.u32 %v170, 2147483648
    %v180 = vsel %vm178, %v179, %v171
    %v181 = vsel %vm174, %v177, %v180
    %v182 = vsel %vm172, nan, %v181
    %v183 = vand.u32 2147483647, %v79
    %vm184 = vcmp.le.f32.partialorder %v183, 0.7853982
    %vm185 = vcmp.lt.s32.totalorder %v79, 0
    %v186 = vand.u32 %v79, 2139095040
    %v187 = vshrl.u32 %v186, 23
    %v188 = vsub.s32 %v187, 127
    %v189 = vand.u32 2147483647, %v79
    %v190 = vand.u32 %v189, 8388607
    %v191 = vor.u32 %v190, 8388608
    %v192 = vsub.s32 0, %v191
    %v193 = vadd.s32 %v188, 1
    %vm194 = vcmp.gt.s32.totalorder %v193, 0
    %v195 = vsel %vm194, %v193, 0
    %v196 = vshrl.u32 %v195, 5
    %v197 = vand.u32 %v195, 31
    %v198 = vsub.s32 32, %v197
    %v199 = vshrl.u32 683565275, %v198
    %v200 = vshll.u32 683565275, %v197
    %v201 = vshrl.u32 2475754826, %v198
    %v202 = vor.u32 %v200, %v201
    %v203 = vshll.u32 2475754826, %v197
    %v204 = vshrl.u32 2131351028, %v198
    %v205 = vor.u32 %v203, %v204
    %v206 = vshll.u32 2131351028, %v197
    %v207 = vshrl.u32 2102212464, %v198
    %v208 = vor.u32 %v206, %v207
    %v209 = vshll.u32 2102212464, %v197
    %v210 = vshrl.u32 920167782, %v198
    %v211 = vor.u32 %v209, %v210
    %v212 = vshll.u32 920167782, %v197
    %v213 = vshrl.u32 1326507024, %v198
    %v214 = vor.u32 %v212, %v213
    %vm215 = vcmp.lt.s32.totalorder %v196, 1
    %vm216 = vcmp.lt.s32.totalorder %v196, 2
    %vm217 = vcmp.lt.s32.totalorder %v196, 3
    %vm218 = vcmp.lt.s32.totalorder %v196, 4
    %v219 = vsel %vm215, %v199, %v202
    %v220 = vsel %vm218, %v208, 2102212464
    %v221 = vsel %vm217, %v205, %v220
    %v222 = vsel %vm216, %v219, %v221
    %v223 = vsel %vm215, %v202, %v205
    %v224 = vsel %vm218, %v211, 920167782
    %v225 = vsel %vm217, %v208, %v224
    %v226 = vsel %vm216, %v223, %v225
    %v227 = vsel %vm215, %v205, %v208
    %v228 = vsel %vm218, %v214, 1326507024
    %v229 = vsel %vm217, %v211, %v228
    %v230 = vsel %vm216, %v227, %v229
    %v231 = vshll.u32 %v191, 8
    %v232 = vmul.u32.u64.compose %v231, %v230
    %v233 = vextract.low.u32 %v232
    %v234 = vextract.high.u32 %v232
    %v235 = vmul.u32.u64.compose %v231, %v226
    %v236 = vextract.low.u32 %v235
    %v237 = vextract.high.u32 %v235
    %v238 = vmul.u32 %v231, %v222
    %v239 = vadd.s32 %v234, %v236
    %vm240 = vc.u32 %v234, %v236
    %v241 = vadd.s32 %v237, 1
    %v242 = vsel %vm240, %v241, %v237
    %v243 = vadd.s32 %v238, %v242
    %v244 = vadd.s32 %v243, 536870912
    %v245 = vshrl.u32 %v244, 30
    %v246 = vshll.u32 %v245, 30
    %v247 = vsub.s32 %v243, %v246
    %vm248 = vcmp.lt.s32.totalorder %v247, 0
    %v249 = vsub.s32 0, %v247
    %v250 = vsel %vm248, %v249, %v247
    %v251 = vclz %v250
    %v252 = vsub.s32 %v251, 2
    %vm253 = vcmp.gt.s32.totalorder 0, %v252
    %v254 = vsel %vm253, 0, %v252
    %v255 = vsub.s32 32, %v254
    %v256 = vshll.u32 %v247, %v254
    %v257 = vshrl.u32 %v239, %v255
    %v258 = vor.u32 %v256, %v257
    %v259 = vsub.s32 4294967266, %v254
    %v260 = vadd.s32 %v259, 127
    %v261 = vshll.u32 %v260, 23
    %v262 = vor.u32 4788187, %v261
    %v263 = vand.u32 2147483647, %v262
    %v265 = vcvt.s32.f32 %v258
    %v266 = vmul.f32 %v265, %v263
    %v267 = vxor.u32 %v266, 2147483648
    %v268 = vsel %vm185, %v267, %v266
    %v269 = vsub.s32 4, %v245
    %v270 = vsel %vm185, %v269, %v245
    %v271 = vsel %vm184, %v79, %v268
    %v272 = vsel %vm184, 0, %v270
    %v273 = vcosq.f32.pop %v271
    %v274 = vsinq.f32.pop %v271
    %vm275 = vweird.f32 %v79
    %v276 = vand.u32 %v272, 3
    %vm277 = vcmp.lt.s32.totalorder %v276, 2
    %vm278 = vcmp.eq.s32.totalorder %v276, 0
    %v279 = vxor.u32 %v274, 2147483648
    %v280 = vsel %vm278, %v273, %v279
    %vm281 = vcmp.eq.s32.totalorder %v276, 2
    %v282 = vxor.u32 %v273, 2147483648
    %v283 = vsel %vm281, %v282, %v274
    %v284 = vsel %vm277, %v280, %v283
    %v285 = vsel %vm275, nan, %v284
    %v286 = vsel %vm57, 1, 0
    %vm287 = vcmp.eq.s32.totalorder %v286, 1
    %v288 = vsel %vm287, %v182, %v78
    %v289 = vsel %vm287, %v285, %v79
    %291 = vset.pattern.permute.xlu0 0
    %292 = vperm.xlu0 %291, %v49
    %v293 = vpop.permute.xlu0 %292
    %296 = vset.pattern.permute.xlu0 0
    %297 = vperm.xlu0 %296, %v50
    %v298 = vpop.permute.xlu0 %297
    %v300 = vmul.f32 %v288, %v293
    %v301 = vmul.f32 %v289, %v298
    %303 = vset.pattern.permute.xlu0 0
    %304 = vperm.xlu0 %303, %v47
    %v305 = vpop.permute.xlu0 %304
    %308 = vset.pattern.permute.xlu0 0
    %309 = vperm.xlu0 %308, %v48
    %v310 = vpop.permute.xlu0 %309
    %v312 = vlaneseq
    %v313 = vshrl.u32 %v312, 7
    %v314 = vsub.s32 0, %v313
    %v315 = vrot.slane %v53, %v314
    %v316 = vmul.f32 %v305, %v315
    %v317 = vmul.f32 %v310, %v315
    %v318 = vlaneseq
    %v319 = vshrl.u32 %v318, 7
    %v320 = vsub.s32 0, %v319
    %v321 = vrot.slane %v54, %v320
    %v322 = vadd.f32 %v316, %v321
    %v323 = vadd.f32 %v317, %v321
    %v324 = vand.u32 2147483647, %v322
    %vm325 = vcmp.le.f32.partialorder %v324, 0.7853982
    %vm326 = vcmp.lt.s32.totalorder %v322, 0
    %v327 = vand.u32 %v322, 2139095040
    %v328 = vshrl.u32 %v327, 23
    %v329 = vsub.s32 %v328, 127
    %v330 = vand.u32 2147483647, %v322
    %v331 = vand.u32 %v330, 8388607
    %v332 = vor.u32 %v331, 8388608
    %v333 = vsub.s32 0, %v332
    %v334 = vadd.s32 %v329, 1
    %vm335 = vcmp.gt.s32.totalorder %v334, 0
    %v336 = vsel %vm335, %v334, 0
    %v337 = vshrl.u32 %v336, 5
    %v338 = vand.u32 %v336, 31
    %v339 = vsub.s32 32, %v338
    %v340 = vshrl.u32 683565275, %v339
    %v341 = vshll.u32 683565275, %v338
    %v342 = vshrl.u32 2475754826, %v339
    %v343 = vor.u32 %v341, %v342
    %v344 = vshll.u32 2475754826, %v338
    %v345 = vshrl.u32 2131351028, %v339
    %v346 = vor.u32 %v344, %v345
    %v347 = vshll.u32 2131351028, %v338
    %v348 = vshrl.u32 2102212464, %v339
    %v349 = vor.u32 %v347, %v348
    %v350 = vshll.u32 2102212464, %v338
    %v351 = vshrl.u32 920167782, %v339
    %v352 = vor.u32 %v350, %v351
    %v353 = vshll.u32 920167782, %v338
    %v354 = vshrl.u32 1326507024, %v339
    %v355 = vor.u32 %v353, %v354
    %vm356 = vcmp.lt.s32.totalorder %v337, 1
    %vm357 = vcmp.lt.s32.totalorder %v337, 2
    %vm358 = vcmp.lt.s32.totalorder %v337, 3
    %vm359 = vcmp.lt.s32.totalorder %v337, 4
    %v360 = vsel %vm356, %v340, %v343
    %v361 = vsel %vm359, %v349, 2102212464
    %v362 = vsel %vm358, %v346, %v361
    %v363 = vsel %vm357, %v360, %v362
    %v364 = vsel %vm356, %v343, %v346
    %v365 = vsel %vm359, %v352, 920167782
    %v366 = vsel %vm358, %v349, %v365
    %v367 = vsel %vm357, %v364, %v366
    %v368 = vsel %vm356, %v346, %v349
    %v369 = vsel %vm359, %v355, 1326507024
    %v370 = vsel %vm358, %v352, %v369
    %v371 = vsel %vm357, %v368, %v370
    %v372 = vshll.u32 %v332, 8
    %v373 = vmul.u32.u64.compose %v372, %v371
    %v374 = vextract.low.u32 %v373
    %v375 = vextract.high.u32 %v373
    %v376 = vmul.u32.u64.compose %v372, %v367
    %v377 = vextract.low.u32 %v376
    %v378 = vextract.high.u32 %v376
    %v379 = vmul.u32 %v372, %v363
    %v380 = vadd.s32 %v375, %v377
    %vm381 = vc.u32 %v375, %v377
    %v382 = vadd.s32 %v378, 1
    %v383 = vsel %vm381, %v382, %v378
    %v384 = vadd.s32 %v379, %v383
    %v385 = vadd.s32 %v384, 536870912
    %v386 = vshrl.u32 %v385, 30
    %v387 = vshll.u32 %v386, 30
    %v388 = vsub.s32 %v384, %v387
    %vm389 = vcmp.lt.s32.totalorder %v388, 0
    %v390 = vsub.s32 0, %v388
    %v391 = vsel %vm389, %v390, %v388
    %v392 = vclz %v391
    %v393 = vsub.s32 %v392, 2
    %vm394 = vcmp.gt.s32.totalorder 0, %v393
    %v395 = vsel %vm394, 0, %v393
    %v396 = vsub.s32 32, %v395
    %v397 = vshll.u32 %v388, %v395
    %v398 = vshrl.u32 %v380, %v396
    %v399 = vor.u32 %v397, %v398
    %v400 = vsub.s32 4294967266, %v395
    %v401 = vadd.s32 %v400, 127
    %v402 = vshll.u32 %v401, 23
    %v403 = vor.u32 4788187, %v402
    %v404 = vand.u32 2147483647, %v403
    %v406 = vcvt.s32.f32 %v399
    %v407 = vmul.f32 %v406, %v404
    %v408 = vxor.u32 %v407, 2147483648
    %v409 = vsel %vm326, %v408, %v407
    %v410 = vsub.s32 4, %v386
    %v411 = vsel %vm326, %v410, %v386
    %v412 = vsel %vm325, %v322, %v409
    %v413 = vsel %vm325, 0, %v411
    %v414 = vcosq.f32.pop %v412
    %v415 = vsinq.f32.pop %v412
    %vm416 = vweird.f32 %v322
    %v417 = vadd.s32 %v413, 3
    %v418 = vand.u32 %v417, 3
    %vm419 = vcmp.lt.s32.totalorder %v418, 2
    %vm420 = vcmp.eq.s32.totalorder %v418, 0
    %v421 = vxor.u32 %v415, 2147483648
    %v422 = vsel %vm420, %v414, %v421
    %vm423 = vcmp.eq.s32.totalorder %v418, 2
    %v424 = vxor.u32 %v414, 2147483648
    %v425 = vsel %vm423, %v424, %v415
    %v426 = vsel %vm419, %v422, %v425
    %v427 = vsel %vm416, nan, %v426
    %v428 = vand.u32 2147483647, %v323
    %vm429 = vcmp.le.f32.partialorder %v428, 0.7853982
    %vm430 = vcmp.lt.s32.totalorder %v323, 0
    %v431 = vand.u32 %v323, 2139095040
    %v432 = vshrl.u32 %v431, 23
    %v433 = vsub.s32 %v432, 127
    %v434 = vand.u32 2147483647, %v323
    %v435 = vand.u32 %v434, 8388607
    %v436 = vor.u32 %v435, 8388608
    %v437 = vsub.s32 0, %v436
    %v438 = vadd.s32 %v433, 1
    %vm439 = vcmp.gt.s32.totalorder %v438, 0
    %v440 = vsel %vm439, %v438, 0
    %v441 = vshrl.u32 %v440, 5
    %v442 = vand.u32 %v440, 31
    %v443 = vsub.s32 32, %v442
    %v444 = vshrl.u32 683565275, %v443
    %v445 = vshll.u32 683565275, %v442
    %v446 = vshrl.u32 2475754826, %v443
    %v447 = vor.u32 %v445, %v446
    %v448 = vshll.u32 2475754826, %v442
    %v449 = vshrl.u32 2131351028, %v443
    %v450 = vor.u32 %v448, %v449
    %v451 = vshll.u32 2131351028, %v442
    %v452 = vshrl.u32 2102212464, %v443
    %v453 = vor.u32 %v451, %v452
    %v454 = vshll.u32 2102212464, %v442
    %v455 = vshrl.u32 920167782, %v443
    %v456 = vor.u32 %v454, %v455
    %v457 = vshll.u32 920167782, %v442
    %v458 = vshrl.u32 1326507024, %v443
    %v459 = vor.u32 %v457, %v458
    %vm460 = vcmp.lt.s32.totalorder %v441, 1
    %vm461 = vcmp.lt.s32.totalorder %v441, 2
    %vm462 = vcmp.lt.s32.totalorder %v441, 3
    %vm463 = vcmp.lt.s32.totalorder %v441, 4
    %v464 = vsel %vm460, %v444, %v447
    %v465 = vsel %vm463, %v453, 2102212464
    %v466 = vsel %vm462, %v450, %v465
    %v467 = vsel %vm461, %v464, %v466
    %v468 = vsel %vm460, %v447, %v450
    %v469 = vsel %vm463, %v456, 920167782
    %v470 = vsel %vm462, %v453, %v469
    %v471 = vsel %vm461, %v468, %v470
    %v472 = vsel %vm460, %v450, %v453
    %v473 = vsel %vm463, %v459, 1326507024
    %v474 = vsel %vm462, %v456, %v473
    %v475 = vsel %vm461, %v472, %v474
    %v476 = vshll.u32 %v436, 8
    %v477 = vmul.u32.u64.compose %v476, %v475
    %v478 = vextract.low.u32 %v477
    %v479 = vextract.high.u32 %v477
    %v480 = vmul.u32.u64.compose %v476, %v471
    %v481 = vextract.low.u32 %v480
    %v482 = vextract.high.u32 %v480
    %v483 = vmul.u32 %v476, %v467
    %v484 = vadd.s32 %v479, %v481
    %vm485 = vc.u32 %v479, %v481
    %v486 = vadd.s32 %v482, 1
    %v487 = vsel %vm485, %v486, %v482
    %v488 = vadd.s32 %v483, %v487
    %v489 = vadd.s32 %v488, 536870912
    %v490 = vshrl.u32 %v489, 30
    %v491 = vshll.u32 %v490, 30
    %v492 = vsub.s32 %v488, %v491
    %vm493 = vcmp.lt.s32.totalorder %v492, 0
    %v494 = vsub.s32 0, %v492
    %v495 = vsel %vm493, %v494, %v492
    %v496 = vclz %v495
    %v497 = vsub.s32 %v496, 2
    %vm498 = vcmp.gt.s32.totalorder 0, %v497
    %v499 = vsel %vm498, 0, %v497
    %v500 = vsub.s32 32, %v499
    %v501 = vshll.u32 %v492, %v499
    %v502 = vshrl.u32 %v484, %v500
    %v503 = vor.u32 %v501, %v502
    %v504 = vsub.s32 4294967266, %v499
    %v505 = vadd.s32 %v504, 127
    %v506 = vshll.u32 %v505, 23
    %v507 = vor.u32 4788187, %v506
    %v508 = vand.u32 2147483647, %v507
    %v510 = vcvt.s32.f32 %v503
    %v511 = vmul.f32 %v510, %v508
    %v512 = vxor.u32 %v511, 2147483648
    %v513 = vsel %vm430, %v512, %v511
    %v514 = vsub.s32 4, %v490
    %v515 = vsel %vm430, %v514, %v490
    %v516 = vsel %vm429, %v323, %v513
    %v517 = vsel %vm429, 0, %v515
    %v518 = vcosq.f32.pop %v516
    %v519 = vsinq.f32.pop %v516
    %vm520 = vweird.f32 %v323
    %v521 = vadd.s32 %v517, 3
    %v522 = vand.u32 %v521, 3
    %vm523 = vcmp.lt.s32.totalorder %v522, 2
    %vm524 = vcmp.eq.s32.totalorder %v522, 0
    %v525 = vxor.u32 %v519, 2147483648
    %v526 = vsel %vm524, %v518, %v525
    %vm527 = vcmp.eq.s32.totalorder %v522, 2
    %v528 = vxor.u32 %v518, 2147483648
    %v529 = vsel %vm527, %v528, %v519
    %v530 = vsel %vm523, %v526, %v529
    %v531 = vsel %vm520, nan, %v530
    %v532 = vsel %vm287, %v427, %v322
    %v533 = vsel %vm287, %v531, %v323
    %v534 = vmul.f32 %v532, %v293
    %v535 = vmul.f32 %v533, %v298
    %v536 = vld [vmem:[%s1] sm:$0xff]
    %v537 = vld [vmem:[%s1 + $0x8] sm:$0xff]
    %v538 = vld [vmem:[%s6] sm:$0x1]
    %vm539 = vcmp.eq.s32.totalorder %v536, 0
    %vm540 = vcmp.eq.s32.totalorder %v537, 0
    %v541 = vsel %vm539, 1, 0
    %v542 = vsel %vm540, 1, 0
    %543 = vset.pattern.permute.xlu0 0
    %544 = vperm.xlu0 %543, %v541
    %v545 = vpop.permute.xlu0 %544
    %546 = vset.pattern.permute.xlu0 0
    %547 = vperm.xlu0 %546, %v542
    %v548 = vpop.permute.xlu0 %547
    %vm549 = vcmp.eq.s32.totalorder %v545, 1
    %vm550 = vcmp.eq.s32.totalorder %v548, 1
    %v551 = vlaneseq
    %v552 = vshrl.u32 %v551, 7
    %v553 = vsub.s32 0, %v552
    %v554 = vrot.slane %v538, %v553
    %v555 = vsel %vm549, %v554, 0.0
    %v556 = vsel %vm550, %v554, 0.0
    %v557 = vadd.f32 %v555, 0.0
    %v558 = vadd.f32 %v556, 0.0
    %v559 = vld [vmem:[%s6 + $0x1] sm:$0x1]
    %vm560 = vcmp.eq.s32.totalorder %v536, 1
    %vm561 = vcmp.eq.s32.totalorder %v537, 1
    %v562 = vsel %vm560, 1, 0
    %v563 = vsel %vm561, 1, 0
    %564 = vset.pattern.permute.xlu0 0
    %565 = vperm.xlu0 %564, %v562
    %v566 = vpop.permute.xlu0 %565
    %567 = vset.pattern.permute.xlu0 0
    %568 = vperm.xlu0 %567, %v563
    %v569 = vpop.permute.xlu0 %568
    %vm570 = vcmp.eq.s32.totalorder %v566, 1
    %vm571 = vcmp.eq.s32.totalorder %v569, 1
    %v572 = vlaneseq
    %v573 = vshrl.u32 %v572, 7
    %v574 = vsub.s32 0, %v573
    %v575 = vrot.slane %v559, %v574
    %v576 = vsel %vm570, %v575, 0.0
    %v577 = vsel %vm571, %v575, 0.0
    %v578 = vadd.f32 %v557, %v576
    %v579 = vadd.f32 %v558, %v577
    %v580 = vld [vmem:[%s6 + $0x2] sm:$0x1]
    %vm581 = vcmp.eq.s32.totalorder %v536, 2
    %vm582 = vcmp.eq.s32.totalorder %v537, 2
    %v583 = vsel %vm581, 1, 0
    %v584 = vsel %vm582, 1, 0
    %585 = vset.pattern.permute.xlu0 0
    %586 = vperm.xlu0 %585, %v583
    %v587 = vpop.permute.xlu0 %586
    %588 = vset.pattern.permute.xlu0 0
    %589 = vperm.xlu0 %588, %v584
    %v590 = vpop.permute.xlu0 %589
    %vm591 = vcmp.eq.s32.totalorder %v587, 1
    %vm592 = vcmp.eq.s32.totalorder %v590, 1
    %v593 = vlaneseq
    %v594 = vshrl.u32 %v593, 7
    %v595 = vsub.s32 0, %v594
    %v596 = vrot.slane %v580, %v595
    %v597 = vsel %vm591, %v596, 0.0
    %v598 = vsel %vm592, %v596, 0.0
    %v599 = vadd.f32 %v578, %v597
    %v600 = vadd.f32 %v579, %v598
    %v601 = vld [vmem:[%s6 + $0x3] sm:$0x1]
    %vm602 = vcmp.eq.s32.totalorder %v536, 3
    %vm603 = vcmp.eq.s32.totalorder %v537, 3
    %v604 = vsel %vm602, 1, 0
    %v605 = vsel %vm603, 1, 0
    %606 = vset.pattern.permute.xlu0 0
    %607 = vperm.xlu0 %606, %v604
    %v608 = vpop.permute.xlu0 %607
    %609 = vset.pattern.permute.xlu0 0
    %610 = vperm.xlu0 %609, %v605
    %v611 = vpop.permute.xlu0 %610
    %vm612 = vcmp.eq.s32.totalorder %v608, 1
    %vm613 = vcmp.eq.s32.totalorder %v611, 1
    %v614 = vlaneseq
    %v615 = vshrl.u32 %v614, 7
    %v616 = vsub.s32 0, %v615
    %v617 = vrot.slane %v601, %v616
    %v618 = vsel %vm612, %v617, 0.0
    %v619 = vsel %vm613, %v617, 0.0
    %v620 = vadd.f32 %v599, %v618
    %v621 = vadd.f32 %v600, %v619
    %s622 = sld [smem:[#allocation2]]
    %s623 = sld [smem:[#allocation2 + $0x1]]
    %s624 = sld [smem:[#allocation2 + $0x2]]
    %v625 = vstv %s622
    %v626 = vmul.f32 %v625, %v300
    %v627 = vmul.f32 %v625, %v301
    %v628 = vadd.f32 %v43, %v626
    %v629 = vadd.f32 %v44, %v627
    %v630 = vstv %s623
    %v631 = vmul.f32 %v630, %v534
    %v632 = vmul.f32 %v630, %v535
    %v633 = vadd.f32 %v628, %v631
    %v634 = vadd.f32 %v629, %v632
    %v635 = vstv %s624
    %v636 = vmul.f32 %v635, %v620
    %v637 = vmul.f32 %v635, %v621
    %v638 = vadd.f32 %v633, %v636
    %v639 = vadd.f32 %v634, %v637
    %640 = vst [vmem:[#allocation5] sm:$0xff] %v638
    %641 = vst [vmem:[#allocation5 + $0x8] sm:$0xff] %v639
    // Predicated region
    $region38: #{tpu_custom_call.1} parent=1 // pred_check
      _
    $region39: #{tpu_custom_call.1} parent=1 // pred_check_branch
      %643 = sbr.rel (0) target = $region41
    $region40: #{tpu_custom_call.1} parent=1 // pred_region
      %s645 = ssub.s32 256, 256
      %646 = vsyncadd [#allocation3], %s645
      %s647 = sshll.u32 [#allocation5], 4
      %s648 = int_to_ptr.vmem [resolvable:$true] %s647
      %653 = dma.vmem_to_hbm [thread:$0]  %s648, 256, %s8, [#allocation3], 128, 128, 8
    $region41: #{tpu_custom_call.1} parent=1 // pred_fallthru
      _
    // Predicated region
    $region42: #{tpu_custom_call.1} parent=1 // pred_check
      _
    $region43: #{tpu_custom_call.1} parent=1 // pred_check_branch
      %655 = sbr.rel (0) target = $region45
    $region44: #{tpu_custom_call.1} parent=1 // pred_region
      %656 = dma.done [#allocation3], 256
    $region45: #{tpu_custom_call.1} parent=1 // pred_fallthru
      _
    %657 = vsyncpa [#allocation3], 1
    %658 = vsyncpa [#allocation4], 1

</llo_original>
